<compile_context>
chip_gen: v5e
topology: v5e:2x2
jax: 0.10.0
libtpu: 0.0.40
codegen_flags: <defaults>
</compile_context>

<pallas_src>
import jax
import jax.numpy as jnp
from jax.experimental import pallas as pl
from jax.experimental.pallas import tpu as pltpu


def _bias_add_kernel(x_ref, b_ref, o_ref):
    # x_ref: (tr, tl); b_ref: (tr, 1) or (1, tl) -> VPU broadcast add.
    o_ref[...] = x_ref[...].astype(o_ref.dtype) + b_ref[...]


def _vmem_working_set_budget():
    """Bytes of VMEM allowed for the double-buffered input+output tiles."""
    cap = 128 * 1024 * 1024
    try:
        info = pltpu.get_tpu_info()
        cap = int(getattr(info, "vmem_capacity_bytes", cap) or cap)
    except Exception:
        # Conservative fallback (v7x-sized) if the query is unavailable.
        cap = 64 * 1024 * 1024
    # Use at most half of physical VMEM (headroom on v7x's 64 MiB; generous on
    # v5e/v6e's 128 MiB), capped at 48 MiB — well past diminishing returns.
    return min(cap // 2, 48 * 1024 * 1024)


def _choose_tiles(R, L, x_itemsize, out_itemsize):
    """Pick (row_tile, lane_tile) obeying the (8, 128)/full-extent rule while
    keeping the whole double-buffered working set inside the VMEM budget."""
    budget = _vmem_working_set_budget()
    # Per-element VMEM footprint: input tile + output tile, each double-buffered.
    bytes_per_elem = 2 * (x_itemsize + out_itemsize)
    sub = 8 * max(1, 4 // x_itemsize)            # sublane pack: 8 f32, 16 bf16
    max_elems = max(budget // bytes_per_elem, sub * 128)

    # Lane tile: full extent when it fits with >= `sub` rows (always legal and
    # lane-dense); otherwise a large multiple of 128.
    if L * sub <= max_elems:
        tl = L
    else:
        tl = max(128, ((max_elems // sub) // 128) * 128)

    # Row tile: full extent when it fits, else a multiple of the sublane pack.
    max_rows = max(1, max_elems // tl)
    if R <= max_rows:
        tr = R
    else:
        tr = max(sub, (max_rows // sub) * sub)
    return tr, tl


def learnable_bias(x, bias):
    """x: (N, C, H, W); bias: (1, C, 1, 1) (PyTorch LearnableBias parameter)."""
    N, C, H, W = x.shape
    hw = H * W
    out_dtype = jnp.promote_types(x.dtype, bias.dtype)   # PyTorch-style promotion
    x_item = jnp.dtype(x.dtype).itemsize
    out_item = jnp.dtype(out_dtype).itemsize

    if hw >= 128:
        # Lane axis = spatial (already lane-dense). Collapse (N, C) into rows.
        R, L = N * C, hw
        x2 = x.reshape(R, L)
        b2 = (jnp.broadcast_to(bias.reshape(1, C, 1), (N, C, 1))
              .reshape(R, 1).astype(out_dtype))
        bias_spec = pl.BlockSpec
        make_bias_spec = lambda tr, tl: pl.BlockSpec((tr, 1), lambda r, l: (r, 0))
    else:
        # Tiny spatial extent: fold channels into the lane axis to stay
        # lane-dense; bias becomes a pre-broadcast row (C*hw elements).
        R, L = N, C * hw
        x2 = x.reshape(R, L)
        b2 = (jnp.broadcast_to(bias.reshape(C, 1), (C, hw))
              .reshape(1, L).astype(out_dtype))
        make_bias_spec = lambda tr, tl: pl.BlockSpec((1, tl), lambda r, l: (0, l))

    tr, tl = _choose_tiles(R, L, x_item, out_item)
    grid = (pl.cdiv(R, tr), pl.cdiv(L, tl))

    budget = _vmem_working_set_budget()
    cost = pl.CostEstimate(
        flops=R * L,
        transcendentals=0,
        bytes_accessed=R * L * (x_item + out_item) + b2.size * out_item,
    )

    out = pl.pallas_call(
        _bias_add_kernel,
        out_shape=jax.ShapeDtypeStruct((R, L), out_dtype),
        grid=grid,
        in_specs=[
            pl.BlockSpec((tr, tl), lambda r, l: (r, l)),
            make_bias_spec(tr, tl),
        ],
        out_specs=pl.BlockSpec((tr, tl), lambda r, l: (r, l)),
        compiler_params=pltpu.CompilerParams(
            # Every grid point is independent -> megacore (v7x: 2 TCs) can
            # shard the loop; harmless on single-TC v5e/v6e.
            dimension_semantics=("parallel", "parallel"),
            # Double-buffered in+out tiles + bias, plus slack for misc.
            vmem_limit_bytes=budget + (4 << 20),
        ),
        cost_estimate=cost,
    )(x2, b2)

    # TODO(synk): pass input_output_aliases={0: 0} when the caller donates x to
    # avoid allocating a second N*C*H*W HBM buffer (semantics unchanged).
    return out.reshape(N, C, H, W)


if __name__ == "__main__":
    key = jax.random.PRNGKey(0)
    kx, kb = jax.random.split(key)

    # Primary shape (NCHW, matches the module's usage).
    N, C, H, W = 2, 4, 16, 16
    x = jax.random.normal(kx, (N, C, H, W), dtype=jnp.float32)
    # nn.Parameter(torch.zeros(1, out_chn, 1, 1)) — same shape; use small
    # deterministic non-zero values so the broadcast add is exercised.
    bias = 0.1 * jax.random.normal(kb, (1, C, 1, 1), dtype=jnp.float32)

    out = jax.block_until_ready(learnable_bias(x, bias))
    ref = x + bias
    assert out.shape == x.shape and out.dtype == ref.dtype
    assert jnp.allclose(out, ref, atol=1e-6), "mismatch vs reference (main path)"

    # Small-spatial path (H*W < 128): lane-dense (N, C*H*W) layout.
    xs = jax.random.normal(kx, (2, 8, 4, 4), dtype=jnp.float32)
    bs = 0.1 * jax.random.normal(kb, (1, 8, 1, 1), dtype=jnp.float32)
    outs = jax.block_until_ready(learnable_bias(xs, bs))
    assert jnp.allclose(outs, xs + bs, atol=1e-6), "mismatch vs reference (small hw)"

    # Mixed precision: bf16 activations + f32 parameter -> f32 output (PyTorch
    # promotion semantics).
    xb = x.astype(jnp.bfloat16)
    outm = jax.block_until_ready(learnable_bias(xb, bias))
    refm = xb + bias
    assert outm.dtype == refm.dtype == jnp.float32
    assert jnp.allclose(outm, refm, atol=1e-6), "mismatch vs reference (mixed dtype)"

    print("KERNEL_OK")
</pallas_src>

<mosaic_0001>
module attributes {stable_mosaic.version = 11 : i64} {
  func.func @_bias_add_kernel(%arg0: i32, %arg1: i32, %arg2: memref<8x256xf32, #tpu.memory_space<vmem>>, %arg3: memref<8x1xf32, #tpu.memory_space<vmem>>, %arg4: memref<8x256xf32, #tpu.memory_space<vmem>>) attributes {dimension_semantics = [#tpu.dimension_semantics<parallel>, #tpu.dimension_semantics<parallel>], iteration_bounds = array<i64: 1, 1>, scalar_prefetch = 0 : i64, scratch_operands = 0 : i64, tpu.core_type = #tpu.core_type<tc>, window_params = [{transform_indices = @transform_0, window_bounds = array<i64: 8, 256>}, {transform_indices = @transform_1, window_bounds = array<i64: 8, 1>}, {transform_indices = @transform_2, window_bounds = array<i64: 8, 256>}]} {
    %c0 = arith.constant 0 : index
    %c0_0 = arith.constant 0 : index
    %0 = vector.load %arg2[%c0, %c0_0] : memref<8x256xf32, #tpu.memory_space<vmem>>, vector<8x256xf32>
    %c0_1 = arith.constant 0 : index
    %c0_2 = arith.constant 0 : index
    %1 = vector.load %arg3[%c0_1, %c0_2] : memref<8x1xf32, #tpu.memory_space<vmem>>, vector<8x1xf32>
    %2 = vector.broadcast %1 : vector<8x1xf32> to vector<8x256xf32>
    %3 = arith.addf %0, %2 : vector<8x256xf32>
    %c0_3 = arith.constant 0 : index
    %c0_4 = arith.constant 0 : index
    %4 = vector.load %arg4[%c0_3, %c0_4] : memref<8x256xf32, #tpu.memory_space<vmem>>, vector<8x256xf32>
    tpu.vector_store %arg4[%c0_3, %c0_4], %3 {strides = array<i32>} : memref<8x256xf32, #tpu.memory_space<vmem>>, vector<8x256xf32>,
    return
  }
  func.func @transform_0(%arg0: i32, %arg1: i32) -> (i32, i32) {
    %c0_i32 = arith.constant 0 : i32
    return %arg0, %arg1 : i32, i32
  }
  func.func @transform_1(%arg0: i32, %arg1: i32) -> (i32, i32) {
    %c0_i32 = arith.constant 0 : i32
    %c0_i32_0 = arith.constant 0 : i32
    return %arg0, %c0_i32 : i32, i32
  }
  func.func @transform_2(%arg0: i32, %arg1: i32) -> (i32, i32) {
    %c0_i32 = arith.constant 0 : i32
    return %arg0, %arg1 : i32, i32
  }
}

</mosaic_0001>

<llo_original>
// kernel: tpu_custom_call.1
$region0: #{tpu_custom_call.1}
  #allocation0 [shape = 'u32[]', space=smem, size = 0x4, offset = 0x4, fixed_abs, tag = 'smem constant byte address 0x4 - core index']
  #allocation1 [shape = 'u32[72,128]{1,0:T(1,128)}', space=vmem, size = 0x9000, scoped, tag = 'internal scratch']
  %s0 = inlined_call_operand.hbm [shape: f32[8,256], index: 0, kind: input, shape index: {}]
  %s1 = inlined_call_operand.vmem [shape: f32[8,1], index: 1, kind: input, shape index: {}]
  %s2 = inlined_call_operand.hbm [shape: f32[8,256], index: 2, kind: output, shape index: {}]
  %s3 = sld [smem:[#allocation0]]
  $region22: #{tpu_custom_call.1} parent=0
    _
  %s5 = ssub.s32 1, %s3
  %s6 = scalar_select 0, %s5, %s3
  $region1: #{tpu_custom_call.1} parent=0
    #allocation2 [shape = 'u8[8192]{0}', space=vmem, size = 0x2000, scoped, tag = 'input window, operand 0, single buffered']
    #allocation3 [shape = 's32[1]{0}', space=sflag, size = 0x4, scoped, tag = 'scoped memory for tpu_custom_call.1']
    #allocation4 [shape = 's32[1]{0}', space=sflag, size = 0x4, scoped, tag = 'scoped memory for tpu_custom_call.1']
    #allocation5 [shape = 'u8[8192]{0}', space=vmem, size = 0x2000, scoped, tag = 'output window, operand 0, single buffered']
    %7 = vsyncpa [#allocation3], 0
    %8 = vsyncpa [#allocation4], 0
    // Predicated region
    $region2: #{tpu_custom_call.1} parent=1 // pred_check
      _
    $region3: #{tpu_custom_call.1} parent=1 // pred_check_branch
      %10 = sbr.rel (0) target = $region5
    $region4: #{tpu_custom_call.1} parent=1 // pred_region
      %12 = vsyncadd [#allocation3], 0
      %s14 = sshll.u32 %s0, 4
      %s15 = int_to_ptr.hbm [resolvable:$true] %s14
      %s16 = sshll.u32 [#allocation2], 4
      %s17 = int_to_ptr.vmem [resolvable:$true] %s16
      %19 = dma.hbm_to_vmem [thread:$0]  %s15, 256, %s17, [#allocation3]
    $region5: #{tpu_custom_call.1} parent=1 // pred_fallthru
      _
    // Predicated region
    $region6: #{tpu_custom_call.1} parent=1 // pred_check
      _
    $region7: #{tpu_custom_call.1} parent=1 // pred_check_branch
      %21 = sbr.rel (0) target = $region9
    $region8: #{tpu_custom_call.1} parent=1 // pred_region
      _
    $region9: #{tpu_custom_call.1} parent=1 // pred_fallthru
      _
    // Predicated region
    $region10: #{tpu_custom_call.1} parent=1 // pred_check
      _
    $region11: #{tpu_custom_call.1} parent=1 // pred_check_branch
      %23 = sbr.rel (0) target = $region13
    $region12: #{tpu_custom_call.1} parent=1 // pred_region
      %25 = dma.done [#allocation3], 256
    $region13: #{tpu_custom_call.1} parent=1 // pred_fallthru
      _
    %v26 = vld [vmem:[#allocation2] sm:$0xff]
    %v27 = vld [vmem:[#allocation2 + $0x8] sm:$0xff]
    %v28 = vld [vmem:[%s1] sm:$0xff]
    %30 = vset.pattern.permute.xlu0 0
    %31 = vperm.xlu0 %30, %v28
    %v32 = vpop.permute.xlu0 %31
    %v34 = vadd.f32 %v26, %v32
    %v35 = vadd.f32 %v27, %v32
    %36 = vst [vmem:[#allocation5] sm:$0xff] %v34
    %37 = vst [vmem:[#allocation5 + $0x8] sm:$0xff] %v35
    // Predicated region
    $region14: #{tpu_custom_call.1} parent=1 // pred_check
      _
    $region15: #{tpu_custom_call.1} parent=1 // pred_check_branch
      %39 = sbr.rel (0) target = $region17
    $region16: #{tpu_custom_call.1} parent=1 // pred_region
      %41 = vsyncadd [#allocation4], 0
      %s43 = sshll.u32 [#allocation5], 4
      %s44 = int_to_ptr.vmem [resolvable:$true] %s43
      %s45 = sshll.u32 %s2, 4
      %s46 = int_to_ptr.hbm [resolvable:$true] %s45
      %48 = dma.vmem_to_hbm [thread:$0]  %s44, 256, %s46, [#allocation4]
    $region17: #{tpu_custom_call.1} parent=1 // pred_fallthru
      _
    // Predicated region
    $region18: #{tpu_custom_call.1} parent=1 // pred_check
      _
    $region19: #{tpu_custom_call.1} parent=1 // pred_check_branch
      %50 = sbr.rel (0) target = $region21
    $region20: #{tpu_custom_call.1} parent=1 // pred_region
      %52 = dma.done [#allocation4], 256
    $region21: #{tpu_custom_call.1} parent=1 // pred_fallthru
      _
    %53 = vsyncpa [#allocation3], 1
    %54 = vsyncpa [#allocation4], 1

</llo_original>
